<compile_context>
chip_gen: v6e
topology: v6e:2x2x1
jax: 0.10.0
libtpu: 0.0.40
codegen_flags: <defaults>
</compile_context>

<pallas_src>
import jax
import jax.numpy as jnp
from jax.experimental import pallas as pl
from jax.experimental.pallas import tpu as pltpu

_LANE = 128


def _round_up(x, m):
    return ((x + m - 1) // m) * m


def _vmem_capacity_bytes():
    try:
        cap = int(pltpu.get_tpu_info().vmem_capacity_bytes)
        if cap > 0:
            return cap
    except Exception:
        pass
    return 64 << 20  # conservative fallback (v7x per-TC VMEM)


def _attention_spa_kernel(x_ref, o_ref):
    # x_ref / o_ref: (Nb, C, T_HW) tile. Channel reduction is axis=1.
    x = x_ref[...]
    m = jnp.max(x, axis=1, keepdims=True)                  # native dtype, exact
    gate = jax.nn.sigmoid(m.astype(jnp.float32))           # (Nb, 1, T_HW) f32
    o_ref[...] = (x * gate.astype(x.dtype)).astype(o_ref.dtype)


def attention_spa(x, *, target_block_bytes=None, min_grid_steps=8):
    """Spatial attention gate: x * sigmoid(max(x, axis=channel)).

    x: (N, C, H, W) float array (NCHW). Returns same shape/dtype.
    """
    N, C, H, W = x.shape
    HW = H * W
    itemsize = jnp.dtype(x.dtype).itemsize

    # Generation-aware block / VMEM budget.
    vmem_cap = _vmem_capacity_bytes()
    if target_block_bytes is None:
        target_block_bytes = (6 << 20) if vmem_cap > (96 << 20) else (4 << 20)
    vmem_cap_limit = min(max(vmem_cap // 2, 16 << 20), 64 << 20)

    # Spatial tile width: multiple of 128 lanes (lane-dense loads/stores),
    # bounded by the per-block byte budget. No HW padding in HBM: the boundary
    # block is ragged and handled by Pallas masked stores.
    row_bytes = max(C * itemsize, 1)
    max_lanes = max(_LANE, (target_block_bytes // row_bytes) // _LANE * _LANE)
    T_HW = min(_round_up(HW, _LANE), max_lanes)
    spatial_tiles = pl.cdiv(HW, T_HW)

    # Pack batch elements per block (amortize per-step overhead) but keep the
    # grid at >= min(min_grid_steps, max achievable) steps for megacore / v7x.
    steps_goal = min(min_grid_steps, N * spatial_tiles)
    per_batch_block_bytes = C * T_HW * itemsize
    Nb = 1
    for d in range(N, 0, -1):
        if N % d != 0:
            continue
        if d * per_batch_block_bytes > target_block_bytes:
            continue
        if (N // d) * spatial_tiles < steps_goal:
            continue
        Nb = d
        break

    grid = (N // Nb, spatial_tiles)
    block_bytes = Nb * per_batch_block_bytes
    # 2x double-buffered input + 2x output + slack, clamped per generation.
    vmem_limit = int(min(max(5 * block_bytes + (2 << 20), 16 << 20),
                         vmem_cap_limit))

    x3 = x.reshape(N, C, HW)  # merges trailing contiguous dims: no HBM pass

    out3 = pl.pallas_call(
        _attention_spa_kernel,
        out_shape=jax.ShapeDtypeStruct((N, C, HW), x.dtype),
        grid_spec=pltpu.PrefetchScalarGridSpec(
            num_scalar_prefetch=0,
            grid=grid,
            in_specs=[pl.BlockSpec((Nb, C, T_HW), lambda n, s: (n, 0, s))],
            out_specs=pl.BlockSpec((Nb, C, T_HW), lambda n, s: (n, 0, s)),
        ),
        compiler_params=pltpu.CompilerParams(
            dimension_semantics=("parallel", "parallel"),
            vmem_limit_bytes=vmem_limit,
        ),
    )(x3)

    return out3.reshape(N, C, H, W)


def attention_spa_ref(x):
    max_out = jnp.max(x, axis=1, keepdims=True)
    return x * jax.nn.sigmoid(max_out)


if __name__ == "__main__":
    key = jax.random.PRNGKey(0)
    # Small shapes consistent with the module's NCHW forward.
    N, C, H, W = 2, 4, 16, 16
    x = jax.random.normal(key, (N, C, H, W), dtype=jnp.float32)

    out = jax.block_until_ready(attention_spa(x))
    ref = attention_spa_ref(x)
    assert out.shape == (N, C, H, W)
    assert out.dtype == x.dtype
    assert jnp.allclose(out, ref, atol=1e-5, rtol=1e-5), "mismatch vs reference"

    # Non-128-aligned spatial size: single ragged block (masked boundary store).
    x2 = jax.random.normal(jax.random.PRNGKey(1), (2, 4, 14, 14), jnp.float32)
    out2 = jax.block_until_ready(attention_spa(x2))
    assert jnp.allclose(out2, attention_spa_ref(x2), atol=1e-5, rtol=1e-5)

    # Force spatial tiling with an evenly divisible HW (multi-step grid).
    x3 = jax.random.normal(jax.random.PRNGKey(2), (2, 8, 32, 32), jnp.float32)
    out3 = jax.block_until_ready(attention_spa(x3, target_block_bytes=16 << 10))
    assert jnp.allclose(out3, attention_spa_ref(x3), atol=1e-5, rtol=1e-5)

    # Force spatial tiling where the LAST spatial tile is ragged.
    x4 = jax.random.normal(jax.random.PRNGKey(3), (2, 8, 18, 18), jnp.float32)
    out4 = jax.block_until_ready(attention_spa(x4, target_block_bytes=8 << 10))
    assert jnp.allclose(out4, attention_spa_ref(x4), atol=1e-5, rtol=1e-5)

    print("KERNEL_OK")
</pallas_src>

<mosaic_0001>
module attributes {stable_mosaic.version = 11 : i64} {
  func.func @_attention_spa_kernel(%arg0: i32, %arg1: i32, %arg2: memref<1x4x256xf32, #tpu.memory_space<vmem>>, %arg3: memref<1x4x256xf32, #tpu.memory_space<vmem>>) attributes {dimension_semantics = [#tpu.dimension_semantics<parallel>, #tpu.dimension_semantics<parallel>], iteration_bounds = array<i64: 2, 1>, scalar_prefetch = 0 : i64, scratch_operands = 0 : i64, tpu.core_type = #tpu.core_type<tc>, window_params = [{transform_indices = @transform_0, window_bounds = array<i64: 1, 4, 256>}, {transform_indices = @transform_1, window_bounds = array<i64: 1, 4, 256>}]} {
    %c0 = arith.constant 0 : index
    %c0_0 = arith.constant 0 : index
    %c0_1 = arith.constant 0 : index
    %0 = vector.load %arg2[%c0, %c0_0, %c0_1] : memref<1x4x256xf32, #tpu.memory_space<vmem>>, vector<1x4x256xf32>
    %cst = arith.constant dense<0xFF800000> : vector<1x256xf32>
    %1 = vector.multi_reduction <maximumf>, %0, %cst [1] : vector<1x4x256xf32> to vector<1x256xf32>
    %2 = vector.shape_cast %1 : vector<1x256xf32> to vector<1x1x256xf32>
    %3 = arith.negf %2 : vector<1x1x256xf32>
    %4 = math.exp %3 : vector<1x1x256xf32>
    %cst_2 = arith.constant 1.000000e+00 : f32
    %5 = vector.broadcast %cst_2 : f32 to vector<1x1x256xf32>
    %6 = arith.addf %5, %4 : vector<1x1x256xf32>
    %7 = arith.divf %5, %6 : vector<1x1x256xf32>
    %8 = vector.broadcast %7 : vector<1x1x256xf32> to vector<1x4x256xf32>
    %9 = arith.mulf %0, %8 : vector<1x4x256xf32>
    %c0_3 = arith.constant 0 : index
    %c0_4 = arith.constant 0 : index
    %c0_5 = arith.constant 0 : index
    %10 = vector.load %arg3[%c0_3, %c0_4, %c0_5] : memref<1x4x256xf32, #tpu.memory_space<vmem>>, vector<1x4x256xf32>
    tpu.vector_store %arg3[%c0_3, %c0_4, %c0_5], %9 {strides = array<i32>} : memref<1x4x256xf32, #tpu.memory_space<vmem>>, vector<1x4x256xf32>,
    return
  }
  func.func @transform_0(%arg0: i32, %arg1: i32) -> (i32, i32, i32) {
    %c0_i32 = arith.constant 0 : i32
    %c0_i32_0 = arith.constant 0 : i32
    return %arg0, %c0_i32, %arg1 : i32, i32, i32
  }
  func.func @transform_1(%arg0: i32, %arg1: i32) -> (i32, i32, i32) {
    %c0_i32 = arith.constant 0 : i32
    %c0_i32_0 = arith.constant 0 : i32
    return %arg0, %c0_i32, %arg1 : i32, i32, i32
  }
}

</mosaic_0001>

<llo_original>
// kernel: tpu_custom_call.1
$region0: #{tpu_custom_call.1}
  #allocation0 [shape = 'u32[]', space=smem, size = 0x4, offset = 0x4, fixed_abs, tag = 'smem constant byte address 0x4 - core index']
  #allocation1 [shape = 'u32[144,128]{1,0:T(1,128)}', space=vmem, size = 0x12000, scoped, tag = 'internal scratch']
  %s0 = inlined_call_operand.hbm [shape: f32[2,4,256], index: 0, kind: input, shape index: {}]
  %s1 = inlined_call_operand.hbm [shape: f32[2,4,256], index: 1, kind: output, shape index: {}]
  %s2 = sld [smem:[#allocation0]]
  $region41: #{tpu_custom_call.1} parent=0
    _
  %s4 = ssub.s32 1, %s2
  %s5 = scalar_select 0, %s4, %s2
  $region1: #{tpu_custom_call.1} parent=0
    #allocation2 [shape = 'u8[8192]{0}', space=vmem, size = 0x2000, scoped, tag = 'input window, operand 0']
    #allocation3 [shape = 's32[2]{0}', space=sflag, size = 0x8, scoped, tag = 'scoped memory for tpu_custom_call.1']
    #allocation4 [shape = 's32[2]{0}', space=sflag, size = 0x8, scoped, tag = 'scoped memory for tpu_custom_call.1']
    #allocation5 [shape = 'u8[8192]{0}', space=vmem, size = 0x2000, scoped, tag = 'output window, operand 0']
    %6 = vsyncpa [#allocation3], 0
    %s7 = scalar_lea.sflag [#allocation3], 1
    %8 = vsyncpa %s7, 0
    %9 = vsyncpa [#allocation4], 0
    %s10 = scalar_lea.sflag [#allocation4], 1
    %11 = vsyncpa %s10, 0
    loop: start=0, step=1, limit=4
    $region2: #{tpu_custom_call.1} parent=1 // loop_pre_header
      _
    $region3: #{tpu_custom_call.1} parent=1 // loop_header
      %s13 = sphi 0, %s17
      %p14 = scmp.ge.s32.totalorder %s13, 4
      %s20 = sphi 0, %s32
      %s21 = sphi 0, %s28
      %s22 = sphi 0, %s20
      %s23 = sphi 0, %s21
      %s24 = sphi 0, %s22
      %s25 = sphi 0, %s23
      %s37 = sphi 0, %s39
      %s40 = sphi 0, %s37
      %s41 = sphi 0, %s40
      %s57 = sphi 0, %s41
      %s65 = sphi 0, %s67
      %s68 = sphi 0, %s65
      %s69 = sphi 0, %s68
      %s85 = sphi 0, %s69
    $region4: #{tpu_custom_call.1} parent=1 // loop_header_branch
      %16 = sbr.rel (%p14) target = $region8
    $region5: #{tpu_custom_call.1} parent=1 // loop_body
      %s18 = ssub.s32 %s13, 1
      %s19 = ssub.s32 %s13, 2
      %s26 = sadd.s32 1, %s21
      %p27 = scmp.ge.s32.totalorder %s26, 1
      %s28 = scalar_select %p27, 0, %s26
      %s29 = sadd.s32 1, %s20
      %s30 = scalar_select %p27, %s29, %s20
      %p31 = scmp.ge.s32.totalorder %s30, 2
      %s32 = scalar_select %p31, 0, %s30
      %s33 = ssub.s32 %s20, %s32
      %s34 = ssub.s32 %s21, %s28
      %s35 = sor.u32 %s33, %s34
      %p36 = scmp.eq.s32.totalorder %s35, 0
      %s38 = sadd.s32 %s37, 1
      %s39 = scalar_select %p36, %s37, %s38
      %p42 = pneg %p36
      %p43 = scmp.eq.s32.totalorder %s13, 1
      %p44 = por %p42, %p43
      %p45 = scmp.ne.s32.totalorder %s37, %s40
      %p46 = scmp.eq.s32.totalorder %s13, 0
      %p47 = por %p45, %p46
      %p48 = scmp.ne.s32.totalorder %s37, %s40
      %p49 = scmp.eq.s32.totalorder %s18, 1
      %p50 = por %p48, %p49
      %p51 = scmp.ne.s32.totalorder %s40, %s41
      %p52 = scmp.eq.s32.totalorder %s18, 0
      %p53 = por %p51, %p52
      %p54 = scmp.ne.s32.totalorder %s40, %s41
      %p55 = scmp.eq.s32.totalorder %s19, 1
      %p56 = por %p54, %p55
      %p58 = scmp.ne.s32.totalorder %s41, %s57
      %p59 = scmp.eq.s32.totalorder %s19, 0
      %p60 = por %p58, %p59
      %s61 = ssub.s32 %s20, %s32
      %s62 = ssub.s32 %s21, %s28
      %s63 = sor.u32 %s61, %s62
      %p64 = scmp.eq.s32.totalorder %s63, 0
      %s66 = sadd.s32 %s65, 1
      %s67 = scalar_select %p64, %s65, %s66
      %p70 = pneg %p64
      %p71 = scmp.eq.s32.totalorder %s13, 1
      %p72 = por %p70, %p71
      %p73 = scmp.ne.s32.totalorder %s65, %s68
      %p74 = scmp.eq.s32.totalorder %s13, 0
      %p75 = por %p73, %p74
      %p76 = scmp.ne.s32.totalorder %s65, %s68
      %p77 = scmp.eq.s32.totalorder %s18, 1
      %p78 = por %p76, %p77
      %p79 = scmp.ne.s32.totalorder %s68, %s69
      %p80 = scmp.eq.s32.totalorder %s18, 0
      %p81 = por %p79, %p80
      %p82 = scmp.ne.s32.totalorder %s68, %s69
      %p83 = scmp.eq.s32.totalorder %s19, 1
      %p84 = por %p82, %p83
      %p86 = scmp.ne.s32.totalorder %s69, %s85
      %p87 = scmp.eq.s32.totalorder %s19, 0
      %p88 = por %p86, %p87
      %p89 = scmp.le.s32.totalorder 1, %s13
      %p90 = scmp.lt.s32.totalorder %s13, 3
      %p91 = pnand %p89, %p90
      %p92 = pneg %p91
      // Predicated region
      $region9: #{tpu_custom_call.1} parent=5 // pred_check
        _
      $region10: #{tpu_custom_call.1} parent=5 // pred_check_branch
        %94 = sbr.rel (%p91) target = $region12
      $region11: #{tpu_custom_call.1} parent=5 // pred_region
        %s95 = ssub.s32 %s13, 1
      $region12: #{tpu_custom_call.1} parent=5 // pred_fallthru
        _
      %p96 = scmp.lt.s32.totalorder %s13, 2
      // Predicated region
      $region13: #{tpu_custom_call.1} parent=5 // pred_check
        %p97 = pneg %p96
      $region14: #{tpu_custom_call.1} parent=5 // pred_check_branch
        %99 = sbr.rel (%p97) target = $region16
      $region15: #{tpu_custom_call.1} parent=5 // pred_region
        // Predicated region
        $region17: #{tpu_custom_call.1} parent=15 // pred_check
          %p100 = pneg %p47
        $region18: #{tpu_custom_call.1} parent=15 // pred_check_branch
          %102 = sbr.rel (%p100) target = $region20
        $region19: #{tpu_custom_call.1} parent=15 // pred_region
          %s103 = sand.u32 %s37, 1
          %s104 = scalar_lea.sflag [#allocation3], %s103
          %s105 = sand.u32 %s37, 1
          %s106 = smul.addr %s105, 8
          %s107 = scalar_lea.vmem [#allocation2], %s106
          %s108 = smul.u32 2, %s21
          %s110 = ssub.s32 128, 128
          %111 = vsyncadd %s104, %s110
          %s112 = smul.addr %s20, 2
          %s113 = sadd.s32 %s108, %s112
          %s114 = smul.addr %s113, 64
          %s115 = scalar_lea.hbm %s0, %s114
          %s117 = sshll.u32 %s107, 4
          %s118 = int_to_ptr.vmem [resolvable:$true] %s117
          %120 = dma.hbm_to_vmem [thread:$0]  %s115, 128, %s118, %s104
        $region20: #{tpu_custom_call.1} parent=15 // pred_fallthru
          _
      $region16: #{tpu_custom_call.1} parent=5 // pred_fallthru
        _
      %p121 = scmp.le.s32.totalorder 1, %s13
      %p122 = scmp.lt.s32.totalorder %s13, 3
      %p123 = pnand %p121, %p122
      %p124 = pneg %p123
      // Predicated region
      $region21: #{tpu_custom_call.1} parent=5 // pred_check
        _
      $region22: #{tpu_custom_call.1} parent=5 // pred_check_branch
        %126 = sbr.rel (%p123) target = $region24
      $region23: #{tpu_custom_call.1} parent=5 // pred_region
        %s127 = ssub.s32 %s13, 1
        %s128 = sand.u32 %s40, 1
        %s129 = scalar_lea.sflag [#allocation3], %s128
        %s130 = sand.u32 %s40, 1
        %s131 = smul.addr %s130, 8
        %s132 = scalar_lea.vmem [#allocation2], %s131
        // Predicated region
        $region25: #{tpu_custom_call.1} parent=23 // pred_check
          %p133 = pneg %p53
        $region26: #{tpu_custom_call.1} parent=23 // pred_check_branch
          %135 = sbr.rel (%p133) target = $region28
        $region27: #{tpu_custom_call.1} parent=23 // pred_region
          %136 = dma.done %s129, 128
        $region28: #{tpu_custom_call.1} parent=23 // pred_fallthru
          _
        %s137 = sand.u32 %s40, 1
        %s138 = scalar_lea.sflag [#allocation3], %s137
        %s139 = sand.u32 %s40, 1
        %s140 = smul.addr %s139, 8
        %s141 = scalar_lea.vmem [#allocation2], %s140
        %p142 = pneg %p53
        %p143 = pneg %p50
        %p144 = pneg %p81
        %p145 = pneg %p78
        %s146 = sand.u32 %s68, 1
        %s147 = scalar_lea.sflag [#allocation4], %s146
        %s148 = sand.u32 %s68, 1
        %s149 = smul.addr %s148, 8
        %s150 = scalar_lea.vmem [#allocation5], %s149
        %s151 = smul.u32 2, %s23
        %s152 = smul.u32 2, %s23
        %v153 = vld [vmem:[%s132] sm:$0xff]
        %v155 = vcombine.high %v153, %v153
        %vm157 = vcmask 1043456
        %v158 = vsel %vm157, %v153, -inf
        %v159 = vrot.slane %v158, 4
        %v160 = vmax.f32 %v158, %v159
        %v161 = vrot.slane %v160, 2
        %v162 = vmax.f32 %v160, %v161
        %v163 = vrot.slane %v162, 1
        %v164 = vmax.f32 %v162, %v163
        %v165 = vsel %vm157, %v155, -inf
        %v166 = vrot.slane %v165, 4
        %v167 = vmax.f32 %v165, %v166
        %v168 = vrot.slane %v167, 2
        %v169 = vmax.f32 %v167, %v168
        %v170 = vrot.slane %v169, 1
        %v171 = vmax.f32 %v169, %v170
        %v172 = vxor.u32 %v164, 2147483648
        %v173 = vxor.u32 %v171, 2147483648
        %v174 = vmul.f32 %v172, 1.442695
        %v175 = vpow.pop %v174
        %v176 = vmul.f32 %v173, 1.442695
        %v177 = vpow.pop %v176
        %v178 = vadd.f32 %v175, 1.0
        %v179 = vadd.f32 %v177, 1.0
        %v180 = vrcp.pop %v178
        %v181 = vmul.f32 1.0, %v180
        %v182 = vrcp.pop %v179
        %v183 = vmul.f32 1.0, %v182
        %v186 = vcombine.low %v181, %v183
        %v188 = vmul.f32 %v153, %v186
        %189 = vst [vmem:[%s150] sm:$0xff] %v188
        %s190 = sand.u32 %s68, 1
        %s191 = scalar_lea.sflag [#allocation4], %s190
        %s192 = sand.u32 %s68, 1
        %s193 = smul.addr %s192, 8
        %s194 = scalar_lea.vmem [#allocation5], %s193
        // Predicated region
        $region29: #{tpu_custom_call.1} parent=23 // pred_check
          %p195 = pneg %p78
        $region30: #{tpu_custom_call.1} parent=23 // pred_check_branch
          %197 = sbr.rel (%p195) target = $region32
        $region31: #{tpu_custom_call.1} parent=23 // pred_region
          %s198 = smul.u32 2, %s23
          %s200 = ssub.s32 128, 128
          %201 = vsyncadd %s191, %s200
          %s202 = smul.addr %s22, 2
          %s203 = sadd.s32 %s198, %s202
          %s204 = smul.addr %s203, 64
          %s205 = scalar_lea.hbm %s1, %s204
          %s207 = sshll.u32 %s194, 4
          %s208 = int_to_ptr.vmem [resolvable:$true] %s207
          %210 = dma.vmem_to_hbm [thread:$0]  %s208, 128, %s205, %s191
        $region32: #{tpu_custom_call.1} parent=23 // pred_fallthru
          _
      $region24: #{tpu_custom_call.1} parent=5 // pred_fallthru
        _
      %p211 = scmp.le.s32.totalorder 2, %s13
      // Predicated region
      $region33: #{tpu_custom_call.1} parent=5 // pred_check
        %p212 = pneg %p211
      $region34: #{tpu_custom_call.1} parent=5 // pred_check_branch
        %214 = sbr.rel (%p212) target = $region36
      $region35: #{tpu_custom_call.1} parent=5 // pred_region
        %s215 = ssub.s32 %s13, 2
        // Predicated region
        $region37: #{tpu_custom_call.1} parent=35 // pred_check
          %p216 = pneg %p84
        $region38: #{tpu_custom_call.1} parent=35 // pred_check_branch
          %218 = sbr.rel (%p216) target = $region40
        $region39: #{tpu_custom_call.1} parent=35 // pred_region
          %s219 = sand.u32 %s69, 1
          %s220 = scalar_lea.sflag [#allocation4], %s219
          %s221 = sand.u32 %s69, 1
          %s222 = smul.addr %s221, 8
          %s223 = scalar_lea.vmem [#allocation5], %s222
          %224 = dma.done %s220, 128
        $region40: #{tpu_custom_call.1} parent=35 // pred_fallthru
          _
      $region36: #{tpu_custom_call.1} parent=5 // pred_fallthru
        _
    $region6: #{tpu_custom_call.1} parent=1 // loop_footer
      %s17 = sadd.s32 1, %s13
    $region7: #{tpu_custom_call.1} parent=1 // loop_footer_branch
      %12 = sbr.rel target = $region3
    $region8: #{tpu_custom_call.1} parent=1 // loop_exit
      _
    %225 = vsyncpa [#allocation3], 1
    %s226 = scalar_lea.sflag [#allocation3], 1
    %227 = vsyncpa %s226, 1
    %228 = vsyncpa [#allocation4], 1
    %s229 = scalar_lea.sflag [#allocation4], 1
    %230 = vsyncpa %s229, 1

</llo_original>
